<compile_context>
chip_gen: v7x
topology: tpu7x:2x2x1
jax: 0.10.0
libtpu: 0.0.40
codegen_flags: <defaults>
</compile_context>

<pallas_src>
import numpy as np
import jax
import jax.numpy as jnp
from jax import lax
from jax.experimental import pallas as pl
from jax.experimental.pallas import tpu as pltpu

# Small demo config (original globals: nbasis=30, nch=4, nx=512)
NBASIS = 6   # nbas
NCH = 4      # number of coils
NX = 16      # spatial size
NF = 8       # number of frames (bat_sz)


def _centered_dft_matrix(n):
    """Matrix Fc s.t. Fc @ v == fftshift(fft(ifftshift(v), norm='ortho'))."""
    eye = np.eye(n)
    fc = np.fft.fftshift(
        np.fft.fft(np.fft.ifftshift(eye, axes=0), axis=0, norm="ortho"), axes=0)
    return fc.astype(np.complex64)


# ---------------------------- kernel A: uv = Vv @ x ----------------------------
def _uv_matmul_kernel(v_ref, x_ref, o_ref):
    o_ref[...] = jnp.dot(v_ref[...], x_ref[...],
                         preferred_element_type=jnp.float32)


def uv_matmul(vv, xflat, *, tile_w=8192):
    """Vv @ xflat, tiled over the wide second axis of xflat."""
    nf, nbas = vv.shape
    _, w = xflat.shape
    tw = min(tile_w, w)
    grid_w = pl.cdiv(w, tw)
    cost = pl.CostEstimate(
        flops=2 * nf * nbas * w,
        transcendentals=0,
        bytes_accessed=4 * (nf * nbas + nbas * w + nf * w))
    return pl.pallas_call(
        _uv_matmul_kernel,
        out_shape=jax.ShapeDtypeStruct((nf, w), jnp.float32),
        grid=(grid_w,),
        in_specs=[pl.BlockSpec((nf, nbas), lambda j: (0, 0)),   # Vv (resident)
                  pl.BlockSpec((nbas, tw), lambda j: (0, j))],  # x tile
        out_specs=pl.BlockSpec((nf, tw), lambda j: (0, j)),     # lane-dense out
        compiler_params=pltpu.CompilerParams(
            dimension_semantics=("parallel",),
            vmem_limit_bytes=48 * 1024 * 1024),
        cost_estimate=cost,
    )(vv, xflat)


# ------------- kernel B: per-(coil, frame-batch) csm-mul + fft2c + mask --------
def _coil_fft_kernel(uvr_ref, uvi_ref, csr_ref, csi_ref, m_ref,
                     fr_ref, fi_ref, or_ref, oi_ref):
    ar = uvr_ref[...]          # (TF, nx, nx)
    ai = uvi_ref[...]
    br = csr_ref[...]          # (nx, nx), broadcast over the frame batch
    bi = csi_ref[...]

    # complex multiply: z = uv * csm
    zr = ar * br - ai * bi
    zi = ar * bi + ai * br

    fr = fr_ref[...]           # Fc real
    fi = fi_ref[...]           # Fc imag
    fs = fr + fi               # for 3-mult (Gauss) complex products

    tf, n = ar.shape[0], ar.shape[1]

    # ---- stage 1: A = Z @ Fc  (transform along the last spatial axis) ----
    # collapse (TF, nx) rows into one big-M 2-D matmul; 3 real matmuls (Gauss).
    zr2 = zr.reshape(tf * n, n)
    zi2 = zi.reshape(tf * n, n)
    p1 = jnp.dot(zr2, fr, preferred_element_type=jnp.float32)
    p2 = jnp.dot(zi2, fi, preferred_element_type=jnp.float32)
    p3 = jnp.dot(zr2 + zi2, fs, preferred_element_type=jnp.float32)
    a_r = (p1 - p2).reshape(tf, n, n)
    a_i = (p3 - p1 - p2).reshape(tf, n, n)

    # ---- stage 2: Y = Fc @ A  (transform along the row axis); Fc^T == Fc ----
    # batched dot_general with the constant DFT matrix broadcast over frames.
    frb = jnp.broadcast_to(fr, (tf, n, n))
    fib = jnp.broadcast_to(fi, (tf, n, n))
    fsb = jnp.broadcast_to(fs, (tf, n, n))

    def bmm(a, b):
        return lax.dot_general(a, b,
                               dimension_numbers=(((2,), (1,)), ((0,), (0,))),
                               preferred_element_type=jnp.float32)

    q1 = bmm(frb, a_r)
    q2 = bmm(fib, a_i)
    q3 = bmm(fsb, a_r + a_i)
    yr = q1 - q2
    yi = q3 - q1 - q2

    m = m_ref[...]             # (TF, nx, nx)
    or_ref[...] = yr * m
    oi_ref[...] = yi * m


def coil_fft_mask(uv_r, uv_i, csm_r, csm_i, mask3d, fc_r, fc_i,
                  *, frames_per_block=4):
    nf, nx, _ = uv_r.shape
    nch = csm_r.shape[0]
    tfb = min(frames_per_block, nf)
    while nf % tfb:            # pick a frame-batch size that divides nf
        tfb -= 1
    grid = (nch, nf // tfb)

    frame_map = lambda c, t: (t, 0, 0)
    coil_map = lambda c, t: (c, 0, 0)
    const_map = lambda c, t: (0, 0)        # constant index -> DMA'd once
    out_map = lambda c, t: (c, t, 0, 0)

    n_mm = 6  # Gauss 3-mult complex products x two transform stages
    cost = pl.CostEstimate(
        flops=nch * nf * n_mm * 2 * nx * nx * nx,
        transcendentals=0,
        bytes_accessed=4 * (2 * nch * nf * nx * nx      # outputs
                            + 2 * nch * nf * nx * nx    # uv re-read per coil
                            + 2 * nch * nx * nx         # csm
                            + nch * nf * nx * nx        # mask re-read per coil
                            + 2 * nx * nx))             # DFT matrices

    return pl.pallas_call(
        _coil_fft_kernel,
        out_shape=(jax.ShapeDtypeStruct((nch, nf, nx, nx), jnp.float32),
                   jax.ShapeDtypeStruct((nch, nf, nx, nx), jnp.float32)),
        grid=grid,
        in_specs=[
            pl.BlockSpec((tfb, nx, nx), frame_map),   # uv real
            pl.BlockSpec((tfb, nx, nx), frame_map),   # uv imag
            pl.BlockSpec((None, nx, nx), coil_map),   # csm real (squeezed)
            pl.BlockSpec((None, nx, nx), coil_map),   # csm imag (squeezed)
            pl.BlockSpec((tfb, nx, nx), frame_map),   # mask
            pl.BlockSpec((nx, nx), const_map),        # Fc real
            pl.BlockSpec((nx, nx), const_map),        # Fc imag
        ],
        out_specs=(pl.BlockSpec((None, tfb, nx, nx), out_map),
                   pl.BlockSpec((None, tfb, nx, nx), out_map)),
        compiler_params=pltpu.CompilerParams(
            dimension_semantics=("parallel", "parallel"),
            vmem_limit_bytes=48 * 1024 * 1024),       # sized for v7x 64 MiB/TC
        cost_estimate=cost,
    )(uv_r, uv_i, csm_r, csm_i, mask3d, fc_r, fc_i)


# ------------------------------- AUV.forward -----------------------------------
def auv_forward(x, mask, vv, csm, *, tile_w=8192, frames_per_block=4):
    """x: (nbas, nx, nx, 2); mask: (nf, nx*nx); vv: (nf, nbas); csm: (nch, nx, nx, 2)."""
    nbas = x.shape[0]
    nf = mask.shape[0]
    nx = csm.shape[1]
    n2 = nx * nx

    # Vv @ x on the native interleaved layout (pure view, no concat / no extra
    # HBM pass in front of the memory-bound matmul) -- identical to PyTorch's
    # `Vv @ reshape(x, (nbas, nx*nx*2))` since Vv is real.
    xflat = x.reshape(nbas, 2 * n2).astype(jnp.float32)
    uv_flat = uv_matmul(vv.astype(jnp.float32), xflat, tile_w=tile_w)  # (nf, 2*n2)

    # small planar split of uv (nf rows << nbas rows of x)
    uv4 = uv_flat.reshape(nf, nx, nx, 2)
    uv_r = uv4[..., 0]
    uv_i = uv4[..., 1]

    mask3d = mask.reshape(nf, nx, nx).astype(jnp.float32)

    fc = _centered_dft_matrix(nx)
    # Fc^T == Fc for even nx (fftshift == ifftshift) -> no transposed copies.
    assert nx % 2 == 0 and np.allclose(fc, fc.T, atol=1e-6), \
        "Fc symmetry trick requires even nx"
    fc_r = jnp.asarray(fc.real, jnp.float32)
    fc_i = jnp.asarray(fc.imag, jnp.float32)

    out_r, out_i = coil_fft_mask(uv_r, uv_i,
                                 csm[..., 0].astype(jnp.float32),
                                 csm[..., 1].astype(jnp.float32),
                                 mask3d, fc_r, fc_i,
                                 frames_per_block=frames_per_block)
    # TODO(synk): if the consumer accepts planar real/imag, return (out_r, out_i)
    # directly and skip this full-output interleaving pass.
    return jnp.stack([out_r, out_i], axis=-1)


def auv_reference(x, mask, vv, csm):
    """Plain-JAX reference mirroring the PyTorch forward (complex FFT path)."""
    nbas = x.shape[0]
    nf = mask.shape[0]
    nx = csm.shape[1]
    uv = (vv @ x.reshape(nbas, nx * nx * 2)).reshape(nf, nx, nx, 2)
    uvc = uv[..., 0] + 1j * uv[..., 1]
    csmc = csm[..., 0] + 1j * csm[..., 1]
    m = mask.reshape(nf, nx, nx)
    outs = []
    for i in range(csm.shape[0]):
        z = uvc * csmc[i][None]
        k = jnp.fft.fftshift(
            jnp.fft.fft2(jnp.fft.ifftshift(z, axes=(-2, -1)), norm="ortho"),
            axes=(-2, -1))
        km = k * m
        outs.append(jnp.stack([km.real, km.imag], axis=-1))
    return jnp.stack(outs, axis=0).astype(jnp.float32)


if __name__ == "__main__":
    key = jax.random.PRNGKey(0)
    k1, k2, k3, k4 = jax.random.split(key, 4)

    x = jax.random.normal(k1, (NBASIS, NX, NX, 2), dtype=jnp.float32)   # basis images
    vv = jax.random.normal(k2, (NF, NBASIS), dtype=jnp.float32)         # temporal basis
    csm = jax.random.normal(k3, (NCH, NX, NX, 2), dtype=jnp.float32)    # coil maps
    mask = (jax.random.uniform(k4, (NF, NX * NX)) > 0.5).astype(jnp.float32)

    # small tile_w so the demo exercises the multi-block pipelined path of kernel A
    out = auv_forward(x, mask, vv, csm, tile_w=256, frames_per_block=4)
    out = jax.block_until_ready(out)

    assert out.shape == (NCH, NF, NX, NX, 2), out.shape

    ref = jax.block_until_ready(auv_reference(x, mask, vv, csm))
    np.testing.assert_allclose(np.asarray(out), np.asarray(ref),
                               atol=2e-3, rtol=2e-3)
    print("KERNEL_OK")
</pallas_src>

<mosaic_0001>
module attributes {stable_mosaic.version = 11 : i64} {
  func.func @_uv_matmul_kernel(%arg0: i32, %arg1: memref<8x6xf32, #tpu.memory_space<vmem>>, %arg2: memref<6x256xf32, #tpu.memory_space<vmem>>, %arg3: memref<8x256xf32, #tpu.memory_space<vmem>>) attributes {dimension_semantics = [#tpu.dimension_semantics<parallel>], iteration_bounds = array<i64: 2>, scalar_prefetch = 0 : i64, scratch_operands = 0 : i64, tpu.core_type = #tpu.core_type<tc>, window_params = [{pipeline_mode = #tpu.pipeline_mode<synchronous>, transform_indices = @transform_0, window_bounds = array<i64: 8, 6>}, {transform_indices = @transform_1, window_bounds = array<i64: 6, 256>}, {transform_indices = @transform_2, window_bounds = array<i64: 8, 256>}]} {
    %c0 = arith.constant 0 : index
    %c0_0 = arith.constant 0 : index
    %0 = vector.load %arg1[%c0, %c0_0] : memref<8x6xf32, #tpu.memory_space<vmem>>, vector<8x6xf32>
    %c0_1 = arith.constant 0 : index
    %c0_2 = arith.constant 0 : index
    %1 = vector.load %arg2[%c0_1, %c0_2] : memref<6x256xf32, #tpu.memory_space<vmem>>, vector<6x256xf32>
    %cst = arith.constant dense<0.000000e+00> : vector<8x256xf32>
    %2 = tpu.matmul %0, %1, %cst {dimension_numbers = #tpu.dot_dimension_numbers<[1], [0], [0], [1], [0, 0, 1, 1], [], []>} : vector<8x6xf32>, vector<6x256xf32>, vector<8x256xf32> -> vector<8x256xf32>
    %c0_3 = arith.constant 0 : index
    %c0_4 = arith.constant 0 : index
    %3 = vector.load %arg3[%c0_3, %c0_4] : memref<8x256xf32, #tpu.memory_space<vmem>>, vector<8x256xf32>
    tpu.vector_store %arg3[%c0_3, %c0_4], %2 {strides = array<i32>} : memref<8x256xf32, #tpu.memory_space<vmem>>, vector<8x256xf32>,
    return
  }
  func.func @transform_0(%arg0: i32) -> (i32, i32) {
    %c0_i32 = arith.constant 0 : i32
    %c0_i32_0 = arith.constant 0 : i32
    %c0_i32_1 = arith.constant 0 : i32
    return %c0_i32, %c0_i32_0 : i32, i32
  }
  func.func @transform_1(%arg0: i32) -> (i32, i32) {
    %c0_i32 = arith.constant 0 : i32
    %c0_i32_0 = arith.constant 0 : i32
    return %c0_i32, %arg0 : i32, i32
  }
  func.func @transform_2(%arg0: i32) -> (i32, i32) {
    %c0_i32 = arith.constant 0 : i32
    %c0_i32_0 = arith.constant 0 : i32
    return %c0_i32, %arg0 : i32, i32
  }
}

</mosaic_0001>

<llo_original>
// kernel: tpu_custom_call.1
$region0: #{tpu_custom_call.1}
  #allocation0 [shape = 'u32[]', space=smem, size = 0x4, offset = 0x4, fixed_abs, tag = 'smem constant byte address 0x4 - core index']
  #allocation1 [shape = 'u32[144,128]{1,0:T(1,128)}', space=vmem, size = 0x12000, scoped, tag = 'internal scratch']
  %s0 = inlined_call_operand.hbm [shape: f32[8,6], index: 0, kind: input, shape index: {}]
  %s1 = inlined_call_operand.hbm [shape: f32[6,512], index: 1, kind: input, shape index: {}]
  %s2 = inlined_call_operand.hbm [shape: f32[8,512], index: 2, kind: output, shape index: {}]
  %s3 = sld [smem:[#allocation0]]
  $region49: #{tpu_custom_call.1} parent=0
    _
  %s5 = ssub.s32 1, %s3
  %s6 = scalar_select 0, %s5, %s3
  $region1: #{tpu_custom_call.1} parent=0
    #allocation2 [shape = 'u8[4096]{0}', space=vmem, size = 0x1000, scoped, tag = 'input window, operand 0, single buffered']
    #allocation3 [shape = 's32[2]{0}', space=sflag, size = 0x8, scoped, tag = 'scoped memory for tpu_custom_call.1']
    #allocation4 [shape = 's32[2]{0}', space=sflag, size = 0x8, scoped, tag = 'scoped memory for tpu_custom_call.1']
    #allocation5 [shape = 'u8[16384]{0}', space=vmem, size = 0x4000, scoped, tag = 'input window, operand 1']
    #allocation6 [shape = 's32[2]{0}', space=sflag, size = 0x8, scoped, tag = 'scoped memory for tpu_custom_call.1']
    #allocation7 [shape = 'u8[16384]{0}', space=vmem, size = 0x4000, scoped, tag = 'output window, operand 0']
    %7 = vsyncpa [#allocation3], 0
    %8 = vsyncpa [#allocation6], 0
    %s9 = scalar_lea.sflag [#allocation6], 1
    %10 = vsyncpa %s9, 0
    %11 = vsyncpa [#allocation4], 0
    %s12 = scalar_lea.sflag [#allocation4], 1
    %13 = vsyncpa %s12, 0
    loop: start=0, step=1, limit=4
    $region2: #{tpu_custom_call.1} parent=1 // loop_pre_header
      _
    $region3: #{tpu_custom_call.1} parent=1 // loop_header
      %s15 = sphi 0, %s19
      %p16 = scmp.ge.s32.totalorder %s15, 4
      %s23 = sphi 0, %s23
      %s25 = sphi 0, %s23
      %s26 = sphi 0, %s25
      %s40 = sphi 0, %s26
      %s46 = sphi 0, %s48
      %s49 = sphi 0, %s46
      %s50 = sphi 0, %s49
      %s66 = sphi 0, %s50
      %s72 = sphi 0, %s74
      %s75 = sphi 0, %s72
      %s76 = sphi 0, %s75
      %s92 = sphi 0, %s76
    $region4: #{tpu_custom_call.1} parent=1 // loop_header_branch
      %18 = sbr.rel (%p16) target = $region8
    $region5: #{tpu_custom_call.1} parent=1 // loop_body
      %s20 = ssub.s32 %s15, 1
      %s21 = ssub.s32 %s15, 2
      %s22 = sadd.s32 %s15, 1
      %s24 = sadd.s32 %s23, 1
      %p27 = scmp.eq.s32.totalorder %s15, 1
      %p28 = scmp.ne.s32.totalorder %s23, %s25
      %p29 = scmp.eq.s32.totalorder %s15, 0
      %p30 = por %p28, %p29
      %p31 = scmp.ne.s32.totalorder %s23, %s25
      %p32 = scmp.eq.s32.totalorder %s20, 1
      %p33 = por %p31, %p32
      %p34 = scmp.ne.s32.totalorder %s25, %s26
      %p35 = scmp.eq.s32.totalorder %s20, 0
      %p36 = por %p34, %p35
      %p37 = scmp.ne.s32.totalorder %s25, %s26
      %p38 = scmp.eq.s32.totalorder %s21, 1
      %p39 = por %p37, %p38
      %p41 = scmp.ne.s32.totalorder %s26, %s40
      %p42 = scmp.eq.s32.totalorder %s21, 0
      %p43 = por %p41, %p42
      %s44 = ssub.s32 %s15, %s22
      %p45 = scmp.eq.s32.totalorder %s44, 0
      %s47 = sadd.s32 %s46, 1
      %s48 = scalar_select %p45, %s46, %s47
      %p51 = pneg %p45
      %p52 = scmp.eq.s32.totalorder %s15, 1
      %p53 = por %p51, %p52
      %p54 = scmp.ne.s32.totalorder %s46, %s49
      %p55 = scmp.eq.s32.totalorder %s15, 0
      %p56 = por %p54, %p55
      %p57 = scmp.ne.s32.totalorder %s46, %s49
      %p58 = scmp.eq.s32.totalorder %s20, 1
      %p59 = por %p57, %p58
      %p60 = scmp.ne.s32.totalorder %s49, %s50
      %p61 = scmp.eq.s32.totalorder %s20, 0
      %p62 = por %p60, %p61
      %p63 = scmp.ne.s32.totalorder %s49, %s50
      %p64 = scmp.eq.s32.totalorder %s21, 1
      %p65 = por %p63, %p64
      %p67 = scmp.ne.s32.totalorder %s50, %s66
      %p68 = scmp.eq.s32.totalorder %s21, 0
      %p69 = por %p67, %p68
      %s70 = ssub.s32 %s15, %s22
      %p71 = scmp.eq.s32.totalorder %s70, 0
      %s73 = sadd.s32 %s72, 1
      %s74 = scalar_select %p71, %s72, %s73
      %p77 = pneg %p71
      %p78 = scmp.eq.s32.totalorder %s15, 1
      %p79 = por %p77, %p78
      %p80 = scmp.ne.s32.totalorder %s72, %s75
      %p81 = scmp.eq.s32.totalorder %s15, 0
      %p82 = por %p80, %p81
      %p83 = scmp.ne.s32.totalorder %s72, %s75
      %p84 = scmp.eq.s32.totalorder %s20, 1
      %p85 = por %p83, %p84
      %p86 = scmp.ne.s32.totalorder %s75, %s76
      %p87 = scmp.eq.s32.totalorder %s20, 0
      %p88 = por %p86, %p87
      %p89 = scmp.ne.s32.totalorder %s75, %s76
      %p90 = scmp.eq.s32.totalorder %s21, 1
      %p91 = por %p89, %p90
      %p93 = scmp.ne.s32.totalorder %s76, %s92
      %p94 = scmp.eq.s32.totalorder %s21, 0
      %p95 = por %p93, %p94
      %p96 = scmp.le.s32.totalorder 1, %s15
      %p97 = scmp.lt.s32.totalorder %s15, 3
      %p98 = pnand %p96, %p97
      %p99 = pneg %p98
      // Predicated region
      $region9: #{tpu_custom_call.1} parent=5 // pred_check
        _
      $region10: #{tpu_custom_call.1} parent=5 // pred_check_branch
        %101 = sbr.rel (%p98) target = $region12
      $region11: #{tpu_custom_call.1} parent=5 // pred_region
        %s102 = ssub.s32 %s15, 1
        // Predicated region
        $region13: #{tpu_custom_call.1} parent=11 // pred_check
          %p103 = pneg %p36
        $region14: #{tpu_custom_call.1} parent=11 // pred_check_branch
          %105 = sbr.rel (%p103) target = $region16
        $region15: #{tpu_custom_call.1} parent=11 // pred_region
          %s107 = ssub.s32 128, 128
          %108 = vsyncadd [#allocation3], %s107
          %s110 = sshll.u32 [#allocation2], 4
          %s111 = int_to_ptr.vmem [resolvable:$true] %s110
          %113 = dma.hbm_to_vmem [thread:$0]  %s0, 128, %s111, [#allocation3]
        $region16: #{tpu_custom_call.1} parent=11 // pred_fallthru
          _
      $region12: #{tpu_custom_call.1} parent=5 // pred_fallthru
        _
      %p114 = scmp.lt.s32.totalorder %s15, 2
      // Predicated region
      $region17: #{tpu_custom_call.1} parent=5 // pred_check
        %p115 = pneg %p114
      $region18: #{tpu_custom_call.1} parent=5 // pred_check_branch
        %117 = sbr.rel (%p115) target = $region20
      $region19: #{tpu_custom_call.1} parent=5 // pred_region
        // Predicated region
        $region21: #{tpu_custom_call.1} parent=19 // pred_check
          %p118 = pneg %p56
        $region22: #{tpu_custom_call.1} parent=19 // pred_check_branch
          %120 = sbr.rel (%p118) target = $region24
        $region23: #{tpu_custom_call.1} parent=19 // pred_region
          %s121 = sand.u32 %s46, 1
          %s122 = scalar_lea.sflag [#allocation6], %s121
          %s123 = sand.u32 %s46, 1
          %s124 = smul.addr %s123, 16
          %s125 = scalar_lea.vmem [#allocation5], %s124
          %s126 = smul.u32 2, %s15
          %s128 = ssub.s32 256, 256
          %129 = vsyncadd %s122, %s128
          %s130 = smul.addr %s126, 128
          %s131 = scalar_lea.hbm %s1, %s130
          %s133 = sshll.u32 %s125, 4
          %s134 = int_to_ptr.vmem [resolvable:$true] %s133
          %136 = dma.hbm_to_vmem [thread:$0]  %s131, 256, %s134, %s122
        $region24: #{tpu_custom_call.1} parent=19 // pred_fallthru
          _
      $region20: #{tpu_custom_call.1} parent=5 // pred_fallthru
        _
      %p137 = scmp.le.s32.totalorder 1, %s15
      %p138 = scmp.lt.s32.totalorder %s15, 3
      %p139 = pnand %p137, %p138
      %p140 = pneg %p139
      // Predicated region
      $region25: #{tpu_custom_call.1} parent=5 // pred_check
        _
      $region26: #{tpu_custom_call.1} parent=5 // pred_check_branch
        %142 = sbr.rel (%p139) target = $region28
      $region27: #{tpu_custom_call.1} parent=5 // pred_region
        %s143 = ssub.s32 %s15, 1
        // Predicated region
        $region29: #{tpu_custom_call.1} parent=27 // pred_check
          %p144 = pneg %p36
        $region30: #{tpu_custom_call.1} parent=27 // pred_check_branch
          %146 = sbr.rel (%p144) target = $region32
        $region31: #{tpu_custom_call.1} parent=27 // pred_region
          %147 = dma.done [#allocation3], 128
        $region32: #{tpu_custom_call.1} parent=27 // pred_fallthru
          _
        %s148 = sand.u32 %s49, 1
        %s149 = scalar_lea.sflag [#allocation6], %s148
        %s150 = sand.u32 %s49, 1
        %s151 = smul.addr %s150, 16
        %s152 = scalar_lea.vmem [#allocation5], %s151
        // Predicated region
        $region33: #{tpu_custom_call.1} parent=27 // pred_check
          %p153 = pneg %p62
        $region34: #{tpu_custom_call.1} parent=27 // pred_check_branch
          %155 = sbr.rel (%p153) target = $region36
        $region35: #{tpu_custom_call.1} parent=27 // pred_region
          %156 = dma.done %s149, 256
        $region36: #{tpu_custom_call.1} parent=27 // pred_fallthru
          _
        %p157 = pneg %p36
        %p158 = pneg %p33
        %s159 = sand.u32 %s49, 1
        %s160 = scalar_lea.sflag [#allocation6], %s159
        %s161 = sand.u32 %s49, 1
        %s162 = smul.addr %s161, 16
        %s163 = scalar_lea.vmem [#allocation5], %s162
        %p164 = pneg %p62
        %p165 = pneg %p59
        %p166 = pneg %p88
        %p167 = pneg %p85
        %s168 = sand.u32 %s75, 1
        %s169 = scalar_lea.sflag [#allocation4], %s168
        %s170 = sand.u32 %s75, 1
        %s171 = smul.addr %s170, 16
        %s172 = scalar_lea.vmem [#allocation7], %s171
        %s173 = smul.u32 2, %s20
        %s174 = smul.u32 2, %s20
        %v175 = vld [vmem:[#allocation2] sm:$0xff]
        %v176 = vld [vmem:[%s152] sm:$0x3f]
        %v177 = vld [vmem:[%s152 + $0x8] sm:$0x3f]
        %vm178 = vcmask 48128
        %v180 = vsel %vm178, %v175, 0
        %vm182 = vcmask 1045504
        %v184 = vsel %vm182, %v176, 0
        %v187 = vsel %vm182, %v177, 0
        %189 = vmatprep.subr.mxu0 %v187
        %190 = vmatpush1.msra.mxu0 %v184
        %191 = vmatprep.subr.mxu0 0.0
        %192 = vmatpush1.msra.mxu0 0.0
        %193 = vmatprep.subr.mxu0 0.0
        %194 = vmatpush1.msra.mxu0 0.0
        %195 = vmatprep.subr.mxu0 0.0
        %196 = vmatpush1.msra.mxu0 0.0
        %197 = vmatprep.subr.mxu0 0.0
        %198 = vmatpush1.msra.mxu0 0.0
        %199 = vmatprep.subr.mxu0 0.0
        %200 = vmatpush1.msra.mxu0 0.0
        %201 = vmatprep.subr.mxu0 0.0
        %202 = vmatpush1.msra.mxu0 0.0
        %203 = vmatprep.subr.mxu0 0.0
        %204 = vmatpush1.msra.mxu0 0.0
        %205 = vmatprep.subr.mxu0 0.0
        %206 = vmatpush1.msra.mxu0 0.0
        %207 = vmatprep.subr.mxu0 0.0
        %208 = vmatpush1.msra.mxu0 0.0
        %209 = vmatprep.subr.mxu0 0.0
        %210 = vmatpush1.msra.mxu0 0.0
        %211 = vmatprep.subr.mxu0 0.0
        %212 = vmatpush1.msra.mxu0 0.0
        %213 = vmatprep.subr.mxu0 0.0
        %214 = vmatpush1.msra.mxu0 0.0
        %215 = vmatprep.subr.mxu0 0.0
        %216 = vmatpush1.msra.mxu0 0.0
        %217 = vmatprep.subr.mxu0 0.0
        %218 = vmatpush1.msra.mxu0 0.0
        %219 = vmatprep.subr.mxu0 0.0
        %220 = vmatpush1.msra.mxu0 0.0
        %221 = vmatprep.subr.mxu0 0.0
        %222 = vmatpush1.msra.mxu0 0.0
        %223 = vmatprep.subr.mxu0 0.0
        %224 = vmatpush1.msra.mxu0 0.0
        %225 = vmatprep.subr.mxu0 0.0
        %226 = vmatpush1.msra.mxu0 0.0
        %227 = vmatprep.subr.mxu0 0.0
        %228 = vmatpush1.msra.mxu0 0.0
        %229 = vmatprep.subr.mxu0 0.0
        %230 = vmatpush1.msra.mxu0 0.0
        %231 = vmatprep.subr.mxu0 0.0
        %232 = vmatpush1.msra.mxu0 0.0
        %233 = vmatprep.subr.mxu0 0.0
        %234 = vmatpush1.msra.mxu0 0.0
        %235 = vmatprep.subr.mxu0 0.0
        %236 = vmatpush1.msra.mxu0 0.0
        %237 = vmatprep.subr.mxu0 0.0
        %238 = vmatpush1.msra.mxu0 0.0
        %239 = vmatprep.subr.mxu0 0.0
        %240 = vmatpush1.msra.mxu0 0.0
        %241 = vmatprep.subr.mxu0 0.0
        %242 = vmatpush1.msra.mxu0 0.0
        %243 = vmatprep.subr.mxu0 0.0
        %244 = vmatpush1.msra.mxu0 0.0
        %245 = vmatprep.subr.mxu0 0.0
        %246 = vmatpush1.msra.mxu0 0.0
        %247 = vmatprep.subr.mxu0 0.0
        %248 = vmatpush1.msra.mxu0 0.0
        %249 = vmatprep.subr.mxu0 0.0
        %250 = vmatpush1.msra.mxu0 0.0
        %251 = vmatprep.subr.mxu0 0.0
        %252 = vmatpush1.msra.mxu0 0.0
        %253 = vmatprep.mubr.f32.mxu0 0.0
        %254 = vmatmul.mubr.f32.gmra.mrb[0].mxu0 %v180
        %v255 = vpop.f32.mrb[0].mxu0
        %v256 = vadd.f32 0.0, %v255
        %v257 = vpop.f32.mrb[0].mxu0
        %v258 = vadd.f32 0.0, %v257
        %259 = vdwg.mxu0
        %260 = vst [vmem:[%s172] sm:$0xff] %v256
        %261 = vst [vmem:[%s172 + $0x8] sm:$0xff] %v258
        %s262 = sand.u32 %s75, 1
        %s263 = scalar_lea.sflag [#allocation4], %s262
        %s264 = sand.u32 %s75, 1
        %s265 = smul.addr %s264, 16
        %s266 = scalar_lea.vmem [#allocation7], %s265
        // Predicated region
        $region37: #{tpu_custom_call.1} parent=27 // pred_check
          %p267 = pneg %p85
        $region38: #{tpu_custom_call.1} parent=27 // pred_check_branch
          %269 = sbr.rel (%p267) target = $region40
        $region39: #{tpu_custom_call.1} parent=27 // pred_region
          %s270 = smul.u32 2, %s20
          %s272 = ssub.s32 256, 256
          %273 = vsyncadd %s263, %s272
          %s274 = smul.addr %s270, 128
          %s275 = scalar_lea.hbm %s2, %s274
          %s277 = sshll.u32 %s266, 4
          %s278 = int_to_ptr.vmem [resolvable:$true] %s277
          %280 = dma.vmem_to_hbm [thread:$0]  %s278, 256, %s275, %s263
        $region40: #{tpu_custom_call.1} parent=27 // pred_fallthru
          _
      $region28: #{tpu_custom_call.1} parent=5 // pred_fallthru
        _
      %p281 = scmp.le.s32.totalorder 2, %s15
      // Predicated region
      $region41: #{tpu_custom_call.1} parent=5 // pred_check
        %p282 = pneg %p281
      $region42: #{tpu_custom_call.1} parent=5 // pred_check_branch
        %284 = sbr.rel (%p282) target = $region44
      $region43: #{tpu_custom_call.1} parent=5 // pred_region
        %s285 = ssub.s32 %s15, 2
        // Predicated region
        $region45: #{tpu_custom_call.1} parent=43 // pred_check
          %p286 = pneg %p91
        $region46: #{tpu_custom_call.1} parent=43 // pred_check_branch
          %288 = sbr.rel (%p286) target = $region48
        $region47: #{tpu_custom_call.1} parent=43 // pred_region
          %s289 = sand.u32 %s76, 1
          %s290 = scalar_lea.sflag [#allocation4], %s289
          %s291 = sand.u32 %s76, 1
          %s292 = smul.addr %s291, 16
          %s293 = scalar_lea.vmem [#allocation7], %s292
          %294 = dma.done %s290, 256
        $region48: #{tpu_custom_call.1} parent=43 // pred_fallthru
          _
      $region44: #{tpu_custom_call.1} parent=5 // pred_fallthru
        _
    $region6: #{tpu_custom_call.1} parent=1 // loop_footer
      %s19 = sadd.s32 1, %s15
    $region7: #{tpu_custom_call.1} parent=1 // loop_footer_branch
      %14 = sbr.rel target = $region3
    $region8: #{tpu_custom_call.1} parent=1 // loop_exit
      _
    %295 = vsyncpa [#allocation3], 1
    %s296 = scalar_lea.sflag [#allocation3], 1
    %297 = vsyncpa %s296, 1
    %298 = vsyncpa [#allocation6], 1
    %s299 = scalar_lea.sflag [#allocation6], 1
    %300 = vsyncpa %s299, 1
    %301 = vsyncpa [#allocation4], 1
    %s302 = scalar_lea.sflag [#allocation4], 1
    %303 = vsyncpa %s302, 1

</llo_original>
